<compile_context>
chip_gen: v6e
topology: v6e:2x2x1
jax: 0.10.0
libtpu: 0.0.40
codegen_flags: <defaults>
</compile_context>

<pallas_src>
import functools

import jax
import jax.numpy as jnp
from jax.experimental import pallas as pl
from jax.experimental.pallas import tpu as pltpu

_LANE = 128


def _round_up(x, m):
    return ((x + m - 1) // m) * m


def _l12_smooth_kernel(x_ref, o_ref, acc_ref, *, a, n, tile_rows, blocks_per_part):
    c = pl.program_id(0)          # partition (parallel) axis
    i = pl.program_id(1)          # reduction (arbitrary) axis

    @pl.when(i == 0)
    def _():
        acc_ref[...] = jnp.zeros_like(acc_ref)

    x = x_ref[...].astype(jnp.float32)
    abs_x = jnp.abs(x)
    x2 = x * x
    poly = ((x2 * x2) * jnp.float32(-1.0 / (8.0 * a ** 3))
            + x2 * jnp.float32(3.0 / (4.0 * a))
            + jnp.float32(3.0 * a / 8.0))
    smooth_abs = jnp.where(abs_x < jnp.float32(a), poly, abs_x)
    contrib = jnp.sqrt(smooth_abs)

    # In-kernel validity mask: global element index < n.  Zeroes lane-padding,
    # partial-block overshoot, and duplicated (clamped) tail blocks, which
    # would otherwise each contribute sqrt(3a/8) or garbage.
    blk = c * blocks_per_part + i
    base = blk * (tile_rows * _LANE)
    row_ids = jax.lax.broadcasted_iota(jnp.int32, (tile_rows, _LANE), 0)
    col_ids = jax.lax.broadcasted_iota(jnp.int32, (tile_rows, _LANE), 1)
    idx = base + row_ids * _LANE + col_ids
    contrib = jnp.where(idx < n, contrib, jnp.float32(0.0))

    # Vector accumulate into the resident (8,128) scratch: pure VPU adds, no
    # per-step cross-lane reduce / SMEM scalar RMW serializing the pipeline.
    acc_ref[...] += jnp.sum(contrib.reshape(tile_rows // 8, 8, _LANE), axis=0)

    @pl.when(i == pl.num_programs(1) - 1)
    def _():
        o_ref[0, 0] = jnp.sum(acc_ref[...])


def _l12_smooth_single(x, a=0.05, tile_rows=4096, num_parts=2):
    """Smoothed L1/2 norm of one array via a Pallas reduction kernel."""
    x = jnp.asarray(x)
    if not jnp.issubdtype(x.dtype, jnp.floating):
        x = x.astype(jnp.float32)
    flat = x.reshape(-1)                      # keep native dtype; cast per-tile in-kernel
    n = int(flat.shape[0])
    if n == 0:
        return jnp.float32(0.0)

    itemsize = jnp.dtype(flat.dtype).itemsize
    sub = max(8, 32 // itemsize)              # sublane tile: 8 (f32) / 16 (bf16) / 32 (8-bit)

    rows = -(-n // _LANE)
    pad = rows * _LANE - n
    if pad:
        flat = jnp.pad(flat, (0, pad))        # only the ragged-lane case pays a copy
    slab = flat.reshape(rows, _LANE)

    tile_rows = max(sub, (int(tile_rows) // sub) * sub)
    tile_rows = min(tile_rows, _round_up(rows, sub))

    n_blocks = -(-rows // tile_rows)
    num_parts = max(1, min(int(num_parts), n_blocks))
    blocks_per_part = -(-n_blocks // num_parts)

    def x_index_map(c, i):
        blk = c * blocks_per_part + i
        # Clamp so a ragged split never indexes past the last block; the
        # in-kernel idx < n mask zeroes any duplicated contribution.
        return (jnp.minimum(blk, n_blocks - 1), 0)

    out = pl.pallas_call(
        functools.partial(_l12_smooth_kernel, a=float(a), n=n,
                          tile_rows=tile_rows, blocks_per_part=blocks_per_part),
        out_shape=jax.ShapeDtypeStruct((num_parts, 1), jnp.float32),
        grid_spec=pltpu.PrefetchScalarGridSpec(
            num_scalar_prefetch=0,
            grid=(num_parts, blocks_per_part),
            in_specs=[pl.BlockSpec((tile_rows, _LANE), x_index_map)],
            out_specs=pl.BlockSpec((1, 1), lambda c, i: (c, 0),
                                   memory_space=pltpu.SMEM),
            scratch_shapes=[pltpu.VMEM((8, _LANE), jnp.float32)],
        ),
        compiler_params=pltpu.CompilerParams(
            dimension_semantics=("parallel", "arbitrary")),
    )(slab)

    return jnp.sum(out)


def l12_smooth(input_tensor, a=0.05):
    """Matches the PyTorch l12_smooth: accepts an array or a list of arrays."""
    if isinstance(input_tensor, (list, tuple)):
        # The PyTorch reference recurses with the DEFAULT a=0.05 for list
        # elements; fuse all tensors into one slab -> a single kernel launch.
        flats = [jnp.asarray(t).reshape(-1) for t in input_tensor]
        if not flats:
            return jnp.float32(0.0)
        dt = jnp.result_type(*[f.dtype for f in flats])
        if not jnp.issubdtype(dt, jnp.floating):
            dt = jnp.float32
        flat = jnp.concatenate([f.astype(dt) for f in flats])
        return _l12_smooth_single(flat, 0.05)
    return _l12_smooth_single(input_tensor, a)


class L12Smooth:
    """JAX/Pallas port of the PyTorch L12Smooth module (no parameters)."""

    def __call__(self, input_tensor, a=0.05):
        return l12_smooth(input_tensor, a)


def _l12_smooth_ref(x, a=0.05):
    """Pure-JAX reference for verification."""
    x = x.astype(jnp.float32)
    smooth_abs = jnp.where(
        jnp.abs(x) < a,
        x ** 4 / (-8.0 * a ** 3) + jnp.square(x) * 3.0 / 4.0 / a + 3.0 * a / 8.0,
        jnp.abs(x),
    )
    return jnp.sum(jnp.sqrt(smooth_abs))


if __name__ == "__main__":
    key = jax.random.PRNGKey(0)
    # "predictions" input; small NCHW-like shape consistent with usage.
    x = jax.random.normal(key, (2, 4, 16, 16), dtype=jnp.float32) * 0.2

    module = L12Smooth()
    out = module(x, a=0.05)
    out = jax.block_until_ready(out)

    ref = _l12_smooth_ref(x, a=0.05)
    assert jnp.allclose(out, ref, rtol=1e-5, atol=1e-4), (out, ref)

    # Also exercise the fused list path once.
    xs = [x, x * 0.1]
    out_list = jax.block_until_ready(module(xs))
    ref_list = _l12_smooth_ref(x) + _l12_smooth_ref(x * 0.1)
    assert jnp.allclose(out_list, ref_list, rtol=1e-5, atol=1e-4), (out_list, ref_list)

    print("KERNEL_OK")
</pallas_src>

<mosaic_0001>
module attributes {stable_mosaic.version = 11 : i64} {
  func.func @_l12_smooth_kernel(%arg0: i32, %arg1: i32, %arg2: memref<16x128xf32, #tpu.memory_space<vmem>>, %arg3: memref<1x1xf32, #tpu.memory_space<smem>>, %arg4: memref<8x128xf32, #tpu.memory_space<vmem>>) attributes {dimension_semantics = [#tpu.dimension_semantics<parallel>, #tpu.dimension_semantics<arbitrary>], iteration_bounds = array<i64: 1, 1>, scalar_prefetch = 0 : i64, scratch_operands = 1 : i64, tpu.core_type = #tpu.core_type<tc>, window_params = [{transform_indices = @transform_0, window_bounds = array<i64: 16, 128>}, {transform_indices = @transform_1, window_bounds = array<i64: 1, 1>}]} {
    %c0_i32 = arith.constant 0 : i32
    %0 = arith.cmpi eq, %arg1, %c0_i32 : i32
    %1 = arith.extui %0 : i1 to i32
    %c0_i32_0 = arith.constant 0 : i32
    %2 = arith.cmpi ne, %1, %c0_i32_0 : i32
    scf.if %2 {
      %cst_14 = arith.constant 0.000000e+00 : f32
      %40 = vector.broadcast %cst_14 : f32 to vector<8x128xf32>
      %c0_15 = arith.constant 0 : index
      %c0_16 = arith.constant 0 : index
      %41 = vector.load %arg4[%c0_15, %c0_16] : memref<8x128xf32, #tpu.memory_space<vmem>>, vector<8x128xf32>
      tpu.vector_store %arg4[%c0_15, %c0_16], %40 {strides = array<i32>} : memref<8x128xf32, #tpu.memory_space<vmem>>, vector<8x128xf32>,
    } else {
    }
    %c0 = arith.constant 0 : index
    %c0_1 = arith.constant 0 : index
    %3 = vector.load %arg2[%c0, %c0_1] : memref<16x128xf32, #tpu.memory_space<vmem>>, vector<16x128xf32>
    %4 = math.absf %3 : vector<16x128xf32>
    %5 = arith.mulf %3, %3 : vector<16x128xf32>
    %6 = arith.mulf %5, %5 : vector<16x128xf32>
    %cst = arith.constant -1.000000e+03 : f32
    %7 = vector.broadcast %cst : f32 to vector<16x128xf32>
    %8 = arith.mulf %6, %7 : vector<16x128xf32>
    %cst_2 = arith.constant 1.500000e+01 : f32
    %9 = vector.broadcast %cst_2 : f32 to vector<16x128xf32>
    %10 = arith.mulf %5, %9 : vector<16x128xf32>
    %11 = arith.addf %8, %10 : vector<16x128xf32>
    %cst_3 = arith.constant 1.875000e-02 : f32
    %12 = vector.broadcast %cst_3 : f32 to vector<16x128xf32>
    %13 = arith.addf %11, %12 : vector<16x128xf32>
    %cst_4 = arith.constant 5.000000e-02 : f32
    %14 = vector.broadcast %cst_4 : f32 to vector<16x128xf32>
    %15 = arith.cmpf olt, %4, %14 : vector<16x128xf32>
    %16 = arith.select %15, %13, %4 : vector<16x128xi1>, vector<16x128xf32>
    %17 = math.sqrt %16 : vector<16x128xf32>
    %c1_i32 = arith.constant 1 : i32
    %18 = arith.muli %arg0, %c1_i32 : i32
    %19 = arith.addi %18, %arg1 : i32
    %c2048_i32 = arith.constant 2048 : i32
    %20 = arith.muli %19, %c2048_i32 : i32
    %21 = tpu.iota {dimensions = array<i32: 0>} : vector<16x128xi32>
    %22 = tpu.iota {dimensions = array<i32: 1>} : vector<16x128xi32>
    %c128_i32 = arith.constant 128 : i32
    %23 = vector.broadcast %c128_i32 : i32 to vector<16x128xi32>
    %24 = arith.muli %21, %23 : vector<16x128xi32>
    %25 = vector.broadcast %20 : i32 to vector<16x128xi32>
    %26 = arith.addi %25, %24 : vector<16x128xi32>
    %27 = arith.addi %26, %22 : vector<16x128xi32>
    %c2048_i32_5 = arith.constant 2048 : i32
    %28 = vector.broadcast %c2048_i32_5 : i32 to vector<16x128xi32>
    %29 = arith.cmpi slt, %27, %28 : vector<16x128xi32>
    %cst_6 = arith.constant 0.000000e+00 : f32
    %30 = vector.broadcast %cst_6 : f32 to vector<16x128xf32>
    %31 = arith.select %29, %17, %30 : vector<16x128xi1>, vector<16x128xf32>
    %c0_7 = arith.constant 0 : index
    %c0_8 = arith.constant 0 : index
    %32 = vector.load %arg4[%c0_7, %c0_8] : memref<8x128xf32, #tpu.memory_space<vmem>>, vector<8x128xf32>
    %33 = vector.shape_cast %31 : vector<16x128xf32> to vector<2x8x128xf32>
    %cst_9 = arith.constant dense<0.000000e+00> : vector<8x128xf32>
    %34 = vector.multi_reduction <add>, %33, %cst_9 [0] : vector<2x8x128xf32> to vector<8x128xf32>
    %35 = arith.addf %32, %34 : vector<8x128xf32>
    %c0_10 = arith.constant 0 : index
    %c0_11 = arith.constant 0 : index
    %36 = vector.load %arg4[%c0_10, %c0_11] : memref<8x128xf32, #tpu.memory_space<vmem>>, vector<8x128xf32>
    tpu.vector_store %arg4[%c0_10, %c0_11], %35 {strides = array<i32>} : memref<8x128xf32, #tpu.memory_space<vmem>>, vector<8x128xf32>,
    %c0_i32_12 = arith.constant 0 : i32
    %37 = arith.cmpi eq, %arg1, %c0_i32_12 : i32
    %38 = arith.extui %37 : i1 to i32
    %c0_i32_13 = arith.constant 0 : i32
    %39 = arith.cmpi ne, %38, %c0_i32_13 : i32
    scf.if %39 {
      %c0_14 = arith.constant 0 : index
      %c0_15 = arith.constant 0 : index
      %40 = vector.load %arg4[%c0_14, %c0_15] : memref<8x128xf32, #tpu.memory_space<vmem>>, vector<8x128xf32>
      %41 = vector.shape_cast %40 : vector<8x128xf32> to vector<1x8x128xf32>
      %cst_16 = arith.constant dense<0.000000e+00> : vector<1xf32>
      %42 = vector.multi_reduction <add>, %41, %cst_16 [1, 2] : vector<1x8x128xf32> to vector<1xf32>
      %43 = vector.shape_cast %42 : vector<1xf32> to vector<1x1x1xf32>
      %44 = vector.extract %43[0, 0, 0] : f32 from vector<1x1x1xf32>
      %c0_17 = arith.constant 0 : index
      %c0_18 = arith.constant 0 : index
      %45 = memref.load %arg3[%c0_17, %c0_18] : memref<1x1xf32, #tpu.memory_space<smem>>
      memref.store %44, %arg3[%c0_17, %c0_18] : memref<1x1xf32, #tpu.memory_space<smem>>
    } else {
    }
    return
  }
  func.func @transform_0(%arg0: i32, %arg1: i32) -> (i32, i32) {
    %c1_i32 = arith.constant 1 : i32
    %0 = arith.muli %arg0, %c1_i32 : i32
    %1 = arith.addi %0, %arg1 : i32
    %c0_i32 = arith.constant 0 : i32
    %2 = arith.minsi %1, %c0_i32 : i32
    %c0_i32_0 = arith.constant 0 : i32
    %c0_i32_1 = arith.constant 0 : i32
    return %2, %c0_i32_0 : i32, i32
  }
  func.func @transform_1(%arg0: i32, %arg1: i32) -> (i32, i32) {
    %c0_i32 = arith.constant 0 : i32
    %c0_i32_0 = arith.constant 0 : i32
    return %arg0, %c0_i32 : i32, i32
  }
}

</mosaic_0001>

<llo_original>
// kernel: tpu_custom_call.1
$region0: #{tpu_custom_call.1}
  #allocation0 [shape = 'u32[]', space=smem, size = 0x4, offset = 0x4, fixed_abs, tag = 'smem constant byte address 0x4 - core index']
  #allocation1 [shape = 'u32[144,128]{1,0:T(1,128)}', space=vmem, size = 0x12000, scoped, tag = 'internal scratch']
  #allocation2 [shape = 'f32[8,128]{1,0:T(8,128)}', space=vmem, size = 0x1000, scoped, tag = 'scratch operand']
  %s0 = inlined_call_operand.hbm [shape: f32[16,128], index: 0, kind: input, shape index: {}]
  %s1 = inlined_call_operand.hbm [shape: f32[1,1], index: 1, kind: output, shape index: {}]
  %s2 = sld [smem:[#allocation0]]
  $region26: #{tpu_custom_call.1} parent=0
    _
  %s4 = ssub.s32 1, %s2
  %s5 = scalar_select 0, %s4, %s2
  $region1: #{tpu_custom_call.1} parent=0
    #allocation3 [shape = 'u8[8192]{0}', space=vmem, size = 0x2000, scoped, tag = 'input window, operand 0, single buffered']
    #allocation4 [shape = 's32[1]{0}', space=sflag, size = 0x4, scoped, tag = 'scoped memory for tpu_custom_call.1']
    #allocation5 [shape = 's32[1]{0}', space=sflag, size = 0x4, scoped, tag = 'scoped memory for tpu_custom_call.1']
    #allocation6 [shape = 'u8[512]{0}', space=smem, size = 0x200, scoped, tag = 'output window, operand 0, single buffered']
    %6 = vsyncpa [#allocation4], 0
    %7 = vsyncpa [#allocation5], 0
    // Predicated region
    $region2: #{tpu_custom_call.1} parent=1 // pred_check
      _
    $region3: #{tpu_custom_call.1} parent=1 // pred_check_branch
      %9 = sbr.rel (0) target = $region5
    $region4: #{tpu_custom_call.1} parent=1 // pred_region
      %s10 = sadd.s32 0, 0
      %p11 = scmp.lt.s32.totalorder %s10, 0
      %s12 = scalar_select %p11, %s10, 0
      %s13 = smul.u32 2, %s12
      %s15 = ssub.s32 256, 256
      %16 = vsyncadd [#allocation4], %s15
      %s17 = smul.addr %s13, 128
      %s18 = scalar_lea.hbm %s0, %s17
      %s19 = sshll.u32 [#allocation3], 4
      %s20 = int_to_ptr.vmem [resolvable:$true] %s19
      %25 = dma.hbm_to_vmem [thread:$0]  %s18, 256, %s20, [#allocation4], 128, 128, 8
    $region5: #{tpu_custom_call.1} parent=1 // pred_fallthru
      _
    // Predicated region
    $region6: #{tpu_custom_call.1} parent=1 // pred_check
      _
    $region7: #{tpu_custom_call.1} parent=1 // pred_check_branch
      %27 = sbr.rel (0) target = $region9
    $region8: #{tpu_custom_call.1} parent=1 // pred_region
      %28 = dma.done [#allocation4], 256
    $region9: #{tpu_custom_call.1} parent=1 // pred_fallthru
      _
    %s29 = sadd.s32 0, 0
    %p30 = scmp.lt.s32.totalorder %s29, 0
    %s31 = scalar_select %p30, %s29, 0
    %s32 = smul.u32 2, %s31
    %p33 = scmp.eq.s32.totalorder 0, 0
    // Predicated region
    $region10: #{tpu_custom_call.1} parent=1 // pred_check
      %p34 = pneg %p33
    $region11: #{tpu_custom_call.1} parent=1 // pred_check_branch
      %36 = sbr.rel (%p34) target = $region13
    $region12: #{tpu_custom_call.1} parent=1 // pred_region
      %37 = vst [vmem:[#allocation2] sm:$0xff] 0.0
    $region13: #{tpu_custom_call.1} parent=1 // pred_fallthru
      _
    %v38 = vld [vmem:[#allocation3] sm:$0xff]
    %v39 = vld [vmem:[#allocation3 + $0x8] sm:$0xff]
    %v40 = vand.u32 2147483647, %v38
    %v41 = vand.u32 2147483647, %v39
    %v42 = vmul.f32 %v38, %v38
    %v43 = vmul.f32 %v39, %v39
    %v44 = vmul.f32 %v42, %v42
    %v45 = vmul.f32 %v43, %v43
    %v46 = vmul.f32 %v44, -1000.0
    %v47 = vmul.f32 %v45, -1000.0
    %v48 = vmul.f32 %v42, 15.0
    %v49 = vmul.f32 %v43, 15.0
    %v50 = vadd.f32 %v46, %v48
    %v51 = vadd.f32 %v47, %v49
    %v52 = vadd.f32 %v50, 0.01875
    %v53 = vadd.f32 %v51, 0.01875
    %vm54 = vcmp.lt.f32.partialorder %v40, 0.05
    %vm55 = vcmp.lt.f32.partialorder %v41, 0.05
    %v56 = vsel %vm54, %v52, %v40
    %v57 = vsel %vm55, %v53, %v41
    %v58 = vrsqrt.pop %v56
    %v59 = vmul.f32 %v56, %v58
    %vm60 = vcmp.eq.f32.partialorder %v56, inf
    %v61 = vsel %vm60, %v56, %v59
    %vm62 = vcmp.eq.f32.partialorder %v56, 0.0
    %v63 = vand.u32 %v56, 2147483648
    %v64 = vsel %vm62, %v63, %v61
    %v65 = vrsqrt.pop %v57
    %v66 = vmul.f32 %v57, %v65
    %vm67 = vcmp.eq.f32.partialorder %v57, inf
    %v68 = vsel %vm67, %v57, %v66
    %vm69 = vcmp.eq.f32.partialorder %v57, 0.0
    %v70 = vand.u32 %v57, 2147483648
    %v71 = vsel %vm69, %v70, %v68
    %s72 = sadd.s32 0, 0
    %s73 = smul.u32 %s72, 2048
    %v74 = vlaneseq
    %v75 = vshrl.u32 %v74, 7
    %v76 = vadd.s32 %v75, 8
    %v77 = vlaneseq
    %v78 = vand.u32 %v77, 127
    %v79 = vmul.u32 %v75, 128
    %v80 = vmul.u32 %v76, 128
    %v81 = vstv %s73
    %v82 = vadd.s32 %v81, %v79
    %v83 = vadd.s32 %v81, %v80
    %v84 = vadd.s32 %v82, %v78
    %v85 = vadd.s32 %v83, %v78
    %vm86 = vcmp.lt.s32.totalorder %v84, 2048
    %vm87 = vcmp.lt.s32.totalorder %v85, 2048
    %v88 = vsel %vm86, %v64, 0.0
    %v89 = vsel %vm87, %v71, 0.0
    %v90 = vld [vmem:[#allocation2] sm:$0xff]
    %v91 = vadd.f32 %v88, %v89
    %v92 = vadd.f32 %v90, %v91
    %93 = vst [vmem:[#allocation2] sm:$0xff] %v92
    // Predicated region
    $region14: #{tpu_custom_call.1} parent=1 // pred_check
      %p94 = pneg %p33
    $region15: #{tpu_custom_call.1} parent=1 // pred_check_branch
      %96 = sbr.rel (%p94) target = $region17
    $region16: #{tpu_custom_call.1} parent=1 // pred_region
      %v97 = vld [vmem:[#allocation2] sm:$0xff]
      %98 = vadd.xlane.f32.xlu0 %v97
      %v99 = vpop.xlane.xlu0 %98
      %v100 = vrot.slane %v99, 4
      %v101 = vadd.f32 %v99, %v100
      %v102 = vrot.slane %v101, 2
      %v103 = vadd.f32 %v101, %v102
      %v104 = vrot.slane %v103, 1
      %v105 = vadd.f32 %v103, %v104
      %s106 = vtos %v105
      %s107 = scalar_lea.smem [#allocation6], 0
      %108 = sst [smem:[%s107]] %s106
    $region17: #{tpu_custom_call.1} parent=1 // pred_fallthru
      _
    // Predicated region
    $region18: #{tpu_custom_call.1} parent=1 // pred_check
      _
    $region19: #{tpu_custom_call.1} parent=1 // pred_check_branch
      %110 = sbr.rel (0) target = $region21
    $region20: #{tpu_custom_call.1} parent=1 // pred_region
      %s112 = ssub.s32 16, 16
      %113 = vsyncadd [#allocation5], %s112
      %116 = dma.smem_to_hbm [#allocation6], 16, %s1, [#allocation5]
    $region21: #{tpu_custom_call.1} parent=1 // pred_fallthru
      _
    // Predicated region
    $region22: #{tpu_custom_call.1} parent=1 // pred_check
      _
    $region23: #{tpu_custom_call.1} parent=1 // pred_check_branch
      %118 = sbr.rel (0) target = $region25
    $region24: #{tpu_custom_call.1} parent=1 // pred_region
      %119 = dma.done [#allocation5], 16
    $region25: #{tpu_custom_call.1} parent=1 // pred_fallthru
      _
    %120 = sfence
    %121 = vsyncpa [#allocation4], 1
    %122 = vsyncpa [#allocation5], 1

</llo_original>
